<compile_context>
chip_gen: v7x
topology: tpu7x:2x2x1
jax: 0.10.0
libtpu: 0.0.40
codegen_flags: <defaults>
</compile_context>

<pallas_src>
import functools
import math

import jax
import jax.numpy as jnp
from jax.experimental import pallas as pl
from jax.experimental.pallas import tpu as pltpu

_LOG_2PI = math.log(2.0 * math.pi)
_SUBLANE = 8
_LANE = 128


def _round_up(x, m):
    return ((x + m - 1) // m) * m


def _pad2(a, rows, cols):
    pr, pc = rows - a.shape[0], cols - a.shape[1]
    if pr or pc:
        a = jnp.pad(a, ((0, pr), (0, pc)))
    return a


def _bayes_sample_kernel(
    x_ref, wmu_ref, wls_ref, bmu_ref, bls_ref, epsw_ref, epsb_ref,   # inputs
    out_ref, lpw_ref, lqw_ref,                                       # outputs
    acc_ref, lpw_acc, lqw_acc,                                       # scratch
    *, inv_2s2, mm_dtype,
):
    i = pl.program_id(0)          # batch-tile index
    k = pl.program_id(2)          # reduction (input_size) tile index
    nk = pl.num_programs(2)

    @pl.when(k == 0)
    def _init():
        acc_ref[...] = jnp.zeros_like(acc_ref)
        lpw_acc[...] = jnp.zeros_like(lpw_acc)
        lqw_acc[...] = jnp.zeros_like(lqw_acc)

    w_mu = wmu_ref[...]
    w_ls = wls_ref[...]
    eps_w = epsw_ref[...]

    # Reparameterized weight sample: one exp + one log per element; the same exp()
    # feeds the variational log-density via a cheap approximate reciprocal.
    # TODO(synk): for extreme |logsigma| switch to the fully-stable softplus form.
    e = jnp.exp(w_ls)
    sp = jnp.log(1.0 + e)             # softplus, matches torch log(1 + exp(x))
    d = sp * eps_w                    # W - W_mu
    w = w_mu + d

    acc_ref[...] += jnp.dot(
        x_ref[...].astype(mm_dtype), w.astype(mm_dtype),
        preferred_element_type=jnp.float32)

    # Log-density partial sums (constants folded out in the wrapper, so zero-padded
    # entries contribute exactly 0).  W tiles are revisited for every batch tile, so
    # only count them at i == 0.
    @pl.when(i == 0)
    def _w_log_densities():
        inv = pl.reciprocal(e, approx=True)           # 1 / exp(logsigma)
        lpw_acc[...] += jnp.sum(-(w * w) * inv_2s2, keepdims=True)
        lqw_acc[...] += jnp.sum(-w_ls - (d * d) * (0.5 * inv * inv), keepdims=True)

    @pl.when(k == nk - 1)
    def _finalize():
        b_mu = bmu_ref[...]
        b_ls = bls_ref[...]
        eps_b = epsb_ref[...]
        eb = jnp.exp(b_ls)
        spb = jnp.log(1.0 + eb)
        db = spb * eps_b
        b = b_mu + db
        out_ref[...] = (acc_ref[...] + b).astype(out_ref.dtype)

        @pl.when(i == 0)
        def _b_log_densities():
            invb = pl.reciprocal(eb, approx=True)
            lpw_acc[...] += jnp.sum(-(b * b) * inv_2s2, keepdims=True)
            lqw_acc[...] += jnp.sum(-b_ls - (db * db) * (0.5 * invb * invb),
                                    keepdims=True)

        # Lane-dense partial-sum slabs, one per (i, j) block (megacore-safe).
        lpw_ref[...] = jnp.broadcast_to(lpw_acc[...], lpw_ref.shape)
        lqw_ref[...] = jnp.broadcast_to(lqw_acc[...], lqw_ref.shape)


def _bayes_infer_kernel(x_ref, wmu_ref, bmu_ref, out_ref, acc_ref, *, mm_dtype):
    k = pl.program_id(2)
    nk = pl.num_programs(2)

    @pl.when(k == 0)
    def _init():
        acc_ref[...] = jnp.zeros_like(acc_ref)

    acc_ref[...] += jnp.dot(
        x_ref[...].astype(mm_dtype), wmu_ref[...].astype(mm_dtype),
        preferred_element_type=jnp.float32)

    @pl.when(k == nk - 1)
    def _finalize():
        out_ref[...] = (acc_ref[...] + bmu_ref[...]).astype(out_ref.dtype)


def bayesian_linear_forward(x, params, sigma_prior, *, infer=False, noise_key=None,
                            tile_m=256, tile_n=256, tile_k=512,
                            matmul_dtype=jnp.float32):
    """JAX wrapper mirroring BayesianLinear.forward.  Returns (lpw, lqw, output).

    matmul_dtype=jnp.bfloat16 enables the 2x MXU path on v6e/v7x (f32 accumulation
    is kept either way); default f32 matches the f32 reference bit-for-bit-ish.
    """
    batch, input_size = x.shape
    output_size = params["W_mu"].shape[1]

    # Lane/sublane-aligned, tile-aligned padded problem sizes.  Padded parameter /
    # noise entries are zero => zero contribution to the matmul and to the
    # (constant-folded) log-density sums.
    m_pad = _round_up(batch, _SUBLANE)
    k_pad = _round_up(input_size, _LANE)
    n_pad = _round_up(output_size, _LANE)
    tm = min(tile_m, m_pad)
    tk = min(tile_k, k_pad)
    tn = min(tile_n, n_pad)
    m_pad = _round_up(m_pad, tm)
    k_pad = _round_up(k_pad, tk)
    n_pad = _round_up(n_pad, tn)
    gm, gn, gk = m_pad // tm, n_pad // tn, k_pad // tk
    grid = (gm, gn, gk)

    x_p = _pad2(x.astype(jnp.float32), m_pad, k_pad)
    w_mu_p = _pad2(params["W_mu"].astype(jnp.float32), k_pad, n_pad)
    b_mu_p = _pad2(params["b_mu"].reshape(1, output_size).astype(jnp.float32), 1, n_pad)

    x_spec = pl.BlockSpec((tm, tk), lambda i, j, k: (i, k))
    w_spec = pl.BlockSpec((tk, tn), lambda i, j, k: (k, j))
    b_spec = pl.BlockSpec((1, tn), lambda i, j, k: (0, j))
    out_spec = pl.BlockSpec((tm, tn), lambda i, j, k: (i, j))
    part_spec = pl.BlockSpec((_SUBLANE, _LANE), lambda i, j, k: (i, j))

    compiler_params = pltpu.CompilerParams(
        dimension_semantics=("parallel", "parallel", "arbitrary"),
        vmem_limit_bytes=32 * 1024 * 1024,
    )

    if infer:
        out_p = pl.pallas_call(
            functools.partial(_bayes_infer_kernel, mm_dtype=matmul_dtype),
            out_shape=jax.ShapeDtypeStruct((m_pad, n_pad), jnp.float32),
            grid_spec=pltpu.PrefetchScalarGridSpec(
                num_scalar_prefetch=0, grid=grid,
                in_specs=[x_spec, w_spec, b_spec],
                out_specs=out_spec,
                scratch_shapes=[pltpu.VMEM((tm, tn), jnp.float32)]),
            compiler_params=compiler_params,
        )(x_p, w_mu_p, b_mu_p)
        return jnp.float32(0.0), jnp.float32(0.0), out_p[:batch, :output_size]

    if noise_key is None:
        raise ValueError("noise_key is required when infer=False")

    w_ls_p = _pad2(params["W_logsigma"].astype(jnp.float32), k_pad, n_pad)
    b_ls_p = _pad2(params["b_logsigma"].reshape(1, output_size).astype(jnp.float32),
                   1, n_pad)

    # Reparameterization noise ~ N(0, sigma_prior); drawn with jax.random so the
    # pure-JAX reference can reproduce it exactly.
    # TODO(synk): generate eps in-kernel with pltpu.prng_seed/stateful_normal to drop
    # one full (K, N) HBM stream (changes the RNG stream vs jax.random).
    kw, kb = jax.random.split(noise_key)
    eps_w = sigma_prior * jax.random.normal(kw, (input_size, output_size), jnp.float32)
    eps_b = sigma_prior * jax.random.normal(kb, (1, output_size), jnp.float32)
    eps_w_p = _pad2(eps_w, k_pad, n_pad)
    eps_b_p = _pad2(eps_b, 1, n_pad)

    kernel = functools.partial(
        _bayes_sample_kernel,
        inv_2s2=float(1.0 / (2.0 * float(sigma_prior) * float(sigma_prior))),
        mm_dtype=matmul_dtype)

    out_p, lpw_part, lqw_part = pl.pallas_call(
        kernel,
        out_shape=(
            jax.ShapeDtypeStruct((m_pad, n_pad), jnp.float32),
            jax.ShapeDtypeStruct((gm * _SUBLANE, gn * _LANE), jnp.float32),
            jax.ShapeDtypeStruct((gm * _SUBLANE, gn * _LANE), jnp.float32),
        ),
        grid_spec=pltpu.PrefetchScalarGridSpec(
            num_scalar_prefetch=0, grid=grid,
            in_specs=[x_spec, w_spec, w_spec, b_spec, b_spec, w_spec, b_spec],
            out_specs=(out_spec, part_spec, part_spec),
            scratch_shapes=[
                pltpu.VMEM((tm, tn), jnp.float32),   # matmul accumulator
                pltpu.VMEM((1, 1), jnp.float32),     # lpw partial accumulator
                pltpu.VMEM((1, 1), jnp.float32),     # lqw partial accumulator
            ]),
        compiler_params=compiler_params,
    )(x_p, w_mu_p, w_ls_p, b_mu_p, b_ls_p, eps_w_p, eps_b_p)

    out = out_p[:batch, :output_size]

    # Add back the per-element additive constants folded out of the kernel.
    n_params = input_size * output_size + output_size
    lpw_const = n_params * (-0.5 * _LOG_2PI - math.log(abs(float(sigma_prior))))
    lqw_const = n_params * (-0.5 * _LOG_2PI)
    lpw = lpw_part[::_SUBLANE, ::_LANE].sum() + jnp.float32(lpw_const)
    lqw = lqw_part[::_SUBLANE, ::_LANE].sum() + jnp.float32(lqw_const)
    return lpw, lqw, out


def _reference_forward(x, params, sigma_prior, eps_w, eps_b):
    """Pure-JAX reference mirroring the torch module exactly."""
    w_mu, w_ls = params["W_mu"], params["W_logsigma"]
    b_mu = params["b_mu"].reshape(1, -1)
    b_ls = params["b_logsigma"].reshape(1, -1)
    w = w_mu + jnp.log(1.0 + jnp.exp(w_ls)) * eps_w
    b = b_mu + jnp.log(1.0 + jnp.exp(b_ls)) * eps_b
    out = x @ w + b
    lg = lambda v: (-0.5 * _LOG_2PI - math.log(abs(float(sigma_prior)))
                    - v * v / (2.0 * float(sigma_prior) ** 2))
    lgl = lambda v, mu, ls: (-0.5 * _LOG_2PI - ls
                             - (v - mu) ** 2 / (2.0 * jnp.exp(ls) ** 2))
    lpw = jnp.sum(lg(w)) + jnp.sum(lg(b))
    lqw = jnp.sum(lgl(w, w_mu, w_ls)) + jnp.sum(lgl(b, b_mu, b_ls))
    return lpw, lqw, out


def _make_params(key, input_size, output_size):
    k_wmu, k_wls, k_bmu, k_bls = jax.random.split(key, 4)
    return {
        "W_mu": 0.01 * jax.random.normal(k_wmu, (input_size, output_size), jnp.float32),
        "W_logsigma": 0.01 * jax.random.normal(k_wls, (input_size, output_size), jnp.float32),
        "b_mu": jax.random.uniform(k_bmu, (output_size,), jnp.float32, -0.01, 0.01),
        "b_logsigma": jax.random.uniform(k_bls, (output_size,), jnp.float32, -0.01, 0.01),
    }


def _run_case(key, batch, input_size, output_size, sigma_prior, *,
              tiles, atol_out, rtol_out, atol_lw, rtol_lw):
    k_p, k_x, k_noise = jax.random.split(key, 3)
    params = _make_params(k_p, input_size, output_size)
    x = jax.random.normal(k_x, (batch, input_size), jnp.float32)
    tm, tn, tk = tiles

    # Sampling path (infer=False).
    lpw, lqw, out = bayesian_linear_forward(
        x, params, sigma_prior, infer=False, noise_key=k_noise,
        tile_m=tm, tile_n=tn, tile_k=tk)
    jax.block_until_ready((lpw, lqw, out))

    # Reference with the same noise draw.
    kw, kb = jax.random.split(k_noise)
    eps_w = sigma_prior * jax.random.normal(kw, (input_size, output_size), jnp.float32)
    eps_b = sigma_prior * jax.random.normal(kb, (1, output_size), jnp.float32)
    ref_lpw, ref_lqw, ref_out = _reference_forward(x, params, sigma_prior, eps_w, eps_b)
    assert jnp.allclose(out, ref_out, atol=atol_out, rtol=rtol_out), "output mismatch"
    assert jnp.allclose(lpw, ref_lpw, atol=atol_lw, rtol=rtol_lw), "lpw mismatch"
    assert jnp.allclose(lqw, ref_lqw, atol=atol_lw, rtol=rtol_lw), "lqw mismatch"

    # Inference path (infer=True): out = x @ W_mu + b_mu.
    _, _, out_inf = bayesian_linear_forward(
        x, params, sigma_prior, infer=True, tile_m=tm, tile_n=tn, tile_k=tk)
    jax.block_until_ready(out_inf)
    ref_inf = x @ params["W_mu"] + params["b_mu"][None, :]
    assert jnp.allclose(out_inf, ref_inf, atol=atol_out, rtol=rtol_out), "infer mismatch"


if __name__ == "__main__":
    key = jax.random.PRNGKey(0)
    k_small, k_multi = jax.random.split(key)

    # Small, forward-consistent shapes (single-tile grid after (8,128) padding).
    _run_case(k_small, batch=2, input_size=32, output_size=16, sigma_prior=0.05,
              tiles=(256, 256, 512),
              atol_out=1e-4, rtol_out=1e-4, atol_lw=1e-2, rtol_lw=1e-4)

    # Small multi-tile grid (2x2x2) to exercise K-axis accumulation, the i==0 gating
    # of the log-density sums, and the per-(i,j) partial reduction (megacore-safe).
    _run_case(k_multi, batch=16, input_size=256, output_size=256, sigma_prior=0.05,
              tiles=(8, 128, 128),
              atol_out=1e-3, rtol_out=1e-3, atol_lw=1.0, rtol_lw=1e-3)

    print("KERNEL_OK")
</pallas_src>

<mosaic_0001>
module attributes {stable_mosaic.version = 11 : i64} {
  func.func @_bayes_sample_kernel(%arg0: i32, %arg1: i32, %arg2: i32, %arg3: memref<8x128xf32, #tpu.memory_space<vmem>>, %arg4: memref<128x128xf32, #tpu.memory_space<vmem>>, %arg5: memref<128x128xf32, #tpu.memory_space<vmem>>, %arg6: memref<1x128xf32, #tpu.memory_space<vmem>>, %arg7: memref<1x128xf32, #tpu.memory_space<vmem>>, %arg8: memref<128x128xf32, #tpu.memory_space<vmem>>, %arg9: memref<1x128xf32, #tpu.memory_space<vmem>>, %arg10: memref<8x128xf32, #tpu.memory_space<vmem>>, %arg11: memref<8x128xf32, #tpu.memory_space<vmem>>, %arg12: memref<8x128xf32, #tpu.memory_space<vmem>>, %arg13: memref<8x128xf32, #tpu.memory_space<vmem>>, %arg14: memref<1x1xf32, #tpu.memory_space<vmem>>, %arg15: memref<1x1xf32, #tpu.memory_space<vmem>>) attributes {dimension_semantics = [#tpu.dimension_semantics<parallel>, #tpu.dimension_semantics<parallel>, #tpu.dimension_semantics<arbitrary>], iteration_bounds = array<i64: 1, 1, 1>, scalar_prefetch = 0 : i64, scratch_operands = 3 : i64, tpu.core_type = #tpu.core_type<tc>, window_params = [{transform_indices = @transform_0, window_bounds = array<i64: 8, 128>}, {transform_indices = @transform_1, window_bounds = array<i64: 128, 128>}, {transform_indices = @transform_2, window_bounds = array<i64: 128, 128>}, {transform_indices = @transform_3, window_bounds = array<i64: 1, 128>}, {transform_indices = @transform_4, window_bounds = array<i64: 1, 128>}, {transform_indices = @transform_5, window_bounds = array<i64: 128, 128>}, {transform_indices = @transform_6, window_bounds = array<i64: 1, 128>}, {transform_indices = @transform_7, window_bounds = array<i64: 8, 128>}, {transform_indices = @transform_8, window_bounds = array<i64: 8, 128>}, {transform_indices = @transform_9, window_bounds = array<i64: 8, 128>}]} {
    %c0_i32 = arith.constant 0 : i32
    %0 = arith.cmpi eq, %arg2, %c0_i32 : i32
    %1 = arith.extui %0 : i1 to i32
    %c0_i32_0 = arith.constant 0 : i32
    %2 = arith.cmpi ne, %1, %c0_i32_0 : i32
    scf.if %2 {
      %cst_17 = arith.constant 0.000000e+00 : f32
      %23 = vector.broadcast %cst_17 : f32 to vector<8x128xf32>
      %c0_18 = arith.constant 0 : index
      %c0_19 = arith.constant 0 : index
      %24 = vector.load %arg13[%c0_18, %c0_19] : memref<8x128xf32, #tpu.memory_space<vmem>>, vector<8x128xf32>
      tpu.vector_store %arg13[%c0_18, %c0_19], %23 {strides = array<i32>} : memref<8x128xf32, #tpu.memory_space<vmem>>, vector<8x128xf32>,
      %cst_20 = arith.constant 0.000000e+00 : f32
      %25 = vector.broadcast %cst_20 : f32 to vector<1x1xf32>
      %c0_21 = arith.constant 0 : index
      %c0_22 = arith.constant 0 : index
      %26 = vector.load %arg14[%c0_21, %c0_22] : memref<1x1xf32, #tpu.memory_space<vmem>>, vector<1x1xf32>
      tpu.vector_store %arg14[%c0_21, %c0_22], %25 {strides = array<i32>} : memref<1x1xf32, #tpu.memory_space<vmem>>, vector<1x1xf32>,
      %cst_23 = arith.constant 0.000000e+00 : f32
      %27 = vector.broadcast %cst_23 : f32 to vector<1x1xf32>
      %c0_24 = arith.constant 0 : index
      %c0_25 = arith.constant 0 : index
      %28 = vector.load %arg15[%c0_24, %c0_25] : memref<1x1xf32, #tpu.memory_space<vmem>>, vector<1x1xf32>
      tpu.vector_store %arg15[%c0_24, %c0_25], %27 {strides = array<i32>} : memref<1x1xf32, #tpu.memory_space<vmem>>, vector<1x1xf32>,
    } else {
    }
    %c0 = arith.constant 0 : index
    %c0_1 = arith.constant 0 : index
    %3 = vector.load %arg4[%c0, %c0_1] : memref<128x128xf32, #tpu.memory_space<vmem>>, vector<128x128xf32>
    %c0_2 = arith.constant 0 : index
    %c0_3 = arith.constant 0 : index
    %4 = vector.load %arg5[%c0_2, %c0_3] : memref<128x128xf32, #tpu.memory_space<vmem>>, vector<128x128xf32>
    %c0_4 = arith.constant 0 : index
    %c0_5 = arith.constant 0 : index
    %5 = vector.load %arg8[%c0_4, %c0_5] : memref<128x128xf32, #tpu.memory_space<vmem>>, vector<128x128xf32>
    %6 = math.exp %4 : vector<128x128xf32>
    %cst = arith.constant 1.000000e+00 : f32
    %7 = vector.broadcast %cst : f32 to vector<128x128xf32>
    %8 = arith.addf %7, %6 : vector<128x128xf32>
    %9 = math.log %8 : vector<128x128xf32>
    %10 = arith.mulf %9, %5 : vector<128x128xf32>
    %11 = arith.addf %3, %10 : vector<128x128xf32>
    %c0_6 = arith.constant 0 : index
    %c0_7 = arith.constant 0 : index
    %12 = vector.load %arg13[%c0_6, %c0_7] : memref<8x128xf32, #tpu.memory_space<vmem>>, vector<8x128xf32>
    %c0_8 = arith.constant 0 : index
    %c0_9 = arith.constant 0 : index
    %13 = vector.load %arg3[%c0_8, %c0_9] : memref<8x128xf32, #tpu.memory_space<vmem>>, vector<8x128xf32>
    %cst_10 = arith.constant dense<0.000000e+00> : vector<8x128xf32>
    %14 = tpu.matmul %13, %11, %cst_10 {dimension_numbers = #tpu.dot_dimension_numbers<[1], [0], [0], [1], [0, 0, 1, 1], [], []>} : vector<8x128xf32>, vector<128x128xf32>, vector<8x128xf32> -> vector<8x128xf32>
    %15 = arith.addf %12, %14 : vector<8x128xf32>
    %c0_11 = arith.constant 0 : index
    %c0_12 = arith.constant 0 : index
    %16 = vector.load %arg13[%c0_11, %c0_12] : memref<8x128xf32, #tpu.memory_space<vmem>>, vector<8x128xf32>
    tpu.vector_store %arg13[%c0_11, %c0_12], %15 {strides = array<i32>} : memref<8x128xf32, #tpu.memory_space<vmem>>, vector<8x128xf32>,
    %c0_i32_13 = arith.constant 0 : i32
    %17 = arith.cmpi eq, %arg0, %c0_i32_13 : i32
    %18 = arith.extui %17 : i1 to i32
    %c0_i32_14 = arith.constant 0 : i32
    %19 = arith.cmpi ne, %18, %c0_i32_14 : i32
    scf.if %19 {
      %23 = tpu.reciprocal %6 {approx = true} : vector<128x128xf32> -> vector<128x128xf32>
      %c0_17 = arith.constant 0 : index
      %c0_18 = arith.constant 0 : index
      %24 = vector.load %arg14[%c0_17, %c0_18] : memref<1x1xf32, #tpu.memory_space<vmem>>, vector<1x1xf32>
      %25 = arith.mulf %11, %11 : vector<128x128xf32>
      %cst_19 = arith.constant 0.000000e+00 : f32
      %26 = vector.broadcast %cst_19 : f32 to vector<128x128xf32>
      %27 = arith.subf %26, %25 : vector<128x128xf32>
      %cst_20 = arith.constant 2.000000e+02 : f32
      %28 = vector.broadcast %cst_20 : f32 to vector<128x128xf32>
      %29 = arith.mulf %27, %28 : vector<128x128xf32>
      %30 = vector.shape_cast %29 : vector<128x128xf32> to vector<1x128x128xf32>
      %cst_21 = arith.constant dense<0.000000e+00> : vector<1xf32>
      %31 = vector.multi_reduction <add>, %30, %cst_21 [1, 2] : vector<1x128x128xf32> to vector<1xf32>
      %32 = vector.shape_cast %31 : vector<1xf32> to vector<1x1x1xf32>
      %33 = vector.extract %32[0, 0, 0] : f32 from vector<1x1x1xf32>
      %34 = vector.broadcast %33 : f32 to vector<1x1xf32>
      %35 = arith.addf %24, %34 : vector<1x1xf32>
      %c0_22 = arith.constant 0 : index
      %c0_23 = arith.constant 0 : index
      %36 = vector.load %arg14[%c0_22, %c0_23] : memref<1x1xf32, #tpu.memory_space<vmem>>, vector<1x1xf32>
      tpu.vector_store %arg14[%c0_22, %c0_23], %35 {strides = array<i32>} : memref<1x1xf32, #tpu.memory_space<vmem>>, vector<1x1xf32>,
      %c0_24 = arith.constant 0 : index
      %c0_25 = arith.constant 0 : index
      %37 = vector.load %arg15[%c0_24, %c0_25] : memref<1x1xf32, #tpu.memory_space<vmem>>, vector<1x1xf32>
      %cst_26 = arith.constant 0.000000e+00 : f32
      %38 = vector.broadcast %cst_26 : f32 to vector<128x128xf32>
      %39 = arith.subf %38, %4 : vector<128x128xf32>
      %40 = arith.mulf %10, %10 : vector<128x128xf32>
      %cst_27 = arith.constant 5.000000e-01 : f32
      %41 = vector.broadcast %cst_27 : f32 to vector<128x128xf32>
      %42 = arith.mulf %41, %23 : vector<128x128xf32>
      %43 = arith.mulf %42, %23 : vector<128x128xf32>
      %44 = arith.mulf %40, %43 : vector<128x128xf32>
      %45 = arith.subf %39, %44 : vector<128x128xf32>
      %46 = vector.shape_cast %45 : vector<128x128xf32> to vector<1x128x128xf32>
      %cst_28 = arith.constant dense<0.000000e+00> : vector<1xf32>
      %47 = vector.multi_reduction <add>, %46, %cst_28 [1, 2] : vector<1x128x128xf32> to vector<1xf32>
      %48 = vector.shape_cast %47 : vector<1xf32> to vector<1x1x1xf32>
      %49 = vector.extract %48[0, 0, 0] : f32 from vector<1x1x1xf32>
      %50 = vector.broadcast %49 : f32 to vector<1x1xf32>
      %51 = arith.addf %37, %50 : vector<1x1xf32>
      %c0_29 = arith.constant 0 : index
      %c0_30 = arith.constant 0 : index
      %52 = vector.load %arg15[%c0_29, %c0_30] : memref<1x1xf32, #tpu.memory_space<vmem>>, vector<1x1xf32>
      tpu.vector_store %arg15[%c0_29, %c0_30], %51 {strides = array<i32>} : memref<1x1xf32, #tpu.memory_space<vmem>>, vector<1x1xf32>,
    } else {
    }
    %c0_i32_15 = arith.constant 0 : i32
    %20 = arith.cmpi eq, %arg2, %c0_i32_15 : i32
    %21 = arith.extui %20 : i1 to i32
    %c0_i32_16 = arith.constant 0 : i32
    %22 = arith.cmpi ne, %21, %c0_i32_16 : i32
    scf.if %22 {
      %c0_17 = arith.constant 0 : index
      %c0_18 = arith.constant 0 : index
      %23 = vector.load %arg6[%c0_17, %c0_18] : memref<1x128xf32, #tpu.memory_space<vmem>>, vector<1x128xf32>
      %c0_19 = arith.constant 0 : index
      %c0_20 = arith.constant 0 : index
      %24 = vector.load %arg7[%c0_19, %c0_20] : memref<1x128xf32, #tpu.memory_space<vmem>>, vector<1x128xf32>
      %c0_21 = arith.constant 0 : index
      %c0_22 = arith.constant 0 : index
      %25 = vector.load %arg9[%c0_21, %c0_22] : memref<1x128xf32, #tpu.memory_space<vmem>>, vector<1x128xf32>
      %26 = math.exp %24 : vector<1x128xf32>
      %cst_23 = arith.constant 1.000000e+00 : f32
      %27 = vector.broadcast %cst_23 : f32 to vector<1x128xf32>
      %28 = arith.addf %27, %26 : vector<1x128xf32>
      %29 = math.log %28 : vector<1x128xf32>
      %30 = arith.mulf %29, %25 : vector<1x128xf32>
      %31 = arith.addf %23, %30 : vector<1x128xf32>
      %c0_24 = arith.constant 0 : index
      %c0_25 = arith.constant 0 : index
      %32 = vector.load %arg13[%c0_24, %c0_25] : memref<8x128xf32, #tpu.memory_space<vmem>>, vector<8x128xf32>
      %33 = vector.broadcast %31 : vector<1x128xf32> to vector<8x128xf32>
      %34 = arith.addf %32, %33 : vector<8x128xf32>
      %c0_26 = arith.constant 0 : index
      %c0_27 = arith.constant 0 : index
      %35 = vector.load %arg10[%c0_26, %c0_27] : memref<8x128xf32, #tpu.memory_space<vmem>>, vector<8x128xf32>
      tpu.vector_store %arg10[%c0_26, %c0_27], %34 {strides = array<i32>} : memref<8x128xf32, #tpu.memory_space<vmem>>, vector<8x128xf32>,
      %c0_i32_28 = arith.constant 0 : i32
      %36 = arith.cmpi eq, %arg0, %c0_i32_28 : i32
      %37 = arith.extui %36 : i1 to i32
      %c0_i32_29 = arith.constant 0 : i32
      %38 = arith.cmpi ne, %37, %c0_i32_29 : i32
      scf.if %38 {
        %47 = tpu.reciprocal %26 {approx = true} : vector<1x128xf32> -> vector<1x128xf32>
        %c0_38 = arith.constant 0 : index
        %c0_39 = arith.constant 0 : index
        %48 = vector.load %arg14[%c0_38, %c0_39] : memref<1x1xf32, #tpu.memory_space<vmem>>, vector<1x1xf32>
        %49 = arith.mulf %31, %31 : vector<1x128xf32>
        %cst_40 = arith.constant 0.000000e+00 : f32
        %50 = vector.broadcast %cst_40 : f32 to vector<1x128xf32>
        %51 = arith.subf %50, %49 : vector<1x128xf32>
        %cst_41 = arith.constant 2.000000e+02 : f32
        %52 = vector.broadcast %cst_41 : f32 to vector<1x128xf32>
        %53 = arith.mulf %51, %52 : vector<1x128xf32>
        %54 = vector.shape_cast %53 : vector<1x128xf32> to vector<1x1x128xf32>
        %cst_42 = arith.constant dense<0.000000e+00> : vector<1xf32>
        %55 = vector.multi_reduction <add>, %54, %cst_42 [1, 2] : vector<1x1x128xf32> to vector<1xf32>
        %56 = vector.shape_cast %55 : vector<1xf32> to vector<1x1x1xf32>
        %57 = vector.extract %56[0, 0, 0] : f32 from vector<1x1x1xf32>
        %58 = vector.broadcast %57 : f32 to vector<1x1xf32>
        %59 = arith.addf %48, %58 : vector<1x1xf32>
        %c0_43 = arith.constant 0 : index
        %c0_44 = arith.constant 0 : index
        %60 = vector.load %arg14[%c0_43, %c0_44] : memref<1x1xf32, #tpu.memory_space<vmem>>, vector<1x1xf32>
        tpu.vector_store %arg14[%c0_43, %c0_44], %59 {strides = array<i32>} : memref<1x1xf32, #tpu.memory_space<vmem>>, vector<1x1xf32>,
        %c0_45 = arith.constant 0 : index
        %c0_46 = arith.constant 0 : index
        %61 = vector.load %arg15[%c0_45, %c0_46] : memref<1x1xf32, #tpu.memory_space<vmem>>, vector<1x1xf32>
        %cst_47 = arith.constant 0.000000e+00 : f32
        %62 = vector.broadcast %cst_47 : f32 to vector<1x128xf32>
        %63 = arith.subf %62, %24 : vector<1x128xf32>
        %64 = arith.mulf %30, %30 : vector<1x128xf32>
        %cst_48 = arith.constant 5.000000e-01 : f32
        %65 = vector.broadcast %cst_48 : f32 to vector<1x128xf32>
        %66 = arith.mulf %65, %47 : vector<1x128xf32>
        %67 = arith.mulf %66, %47 : vector<1x128xf32>
        %68 = arith.mulf %64, %67 : vector<1x128xf32>
        %69 = arith.subf %63, %68 : vector<1x128xf32>
        %70 = vector.shape_cast %69 : vector<1x128xf32> to vector<1x1x128xf32>
        %cst_49 = arith.constant dense<0.000000e+00> : vector<1xf32>
        %71 = vector.multi_reduction <add>, %70, %cst_49 [1, 2] : vector<1x1x128xf32> to vector<1xf32>
        %72 = vector.shape_cast %71 : vector<1xf32> to vector<1x1x1xf32>
        %73 = vector.extract %72[0, 0, 0] : f32 from vector<1x1x1xf32>
        %74 = vector.broadcast %73 : f32 to vector<1x1xf32>
        %75 = arith.addf %61, %74 : vector<1x1xf32>
        %c0_50 = arith.constant 0 : index
        %c0_51 = arith.constant 0 : index
        %76 = vector.load %arg15[%c0_50, %c0_51] : memref<1x1xf32, #tpu.memory_space<vmem>>, vector<1x1xf32>
        tpu.vector_store %arg15[%c0_50, %c0_51], %75 {strides = array<i32>} : memref<1x1xf32, #tpu.memory_space<vmem>>, vector<1x1xf32>,
      } else {
      }
      %c0_30 = arith.constant 0 : index
      %c0_31 = arith.constant 0 : index
      %39 = vector.load %arg14[%c0_30, %c0_31] : memref<1x1xf32, #tpu.memory_space<vmem>>, vector<1x1xf32>
      %40 = vector.shape_cast %39 : vector<1x1xf32> to vector<1x1xf32>
      %41 = vector.broadcast %40 : vector<1x1xf32> to vector<8x128xf32>
      %c0_32 = arith.constant 0 : index
      %c0_33 = arith.constant 0 : index
      %42 = vector.load %arg11[%c0_32, %c0_33] : memref<8x128xf32, #tpu.memory_space<vmem>>, vector<8x128xf32>
      tpu.vector_store %arg11[%c0_32, %c0_33], %41 {strides = array<i32>} : memref<8x128xf32, #tpu.memory_space<vmem>>, vector<8x128xf32>,
      %c0_34 = arith.constant 0 : index
      %c0_35 = arith.constant 0 : index
      %43 = vector.load %arg15[%c0_34, %c0_35] : memref<1x1xf32, #tpu.memory_space<vmem>>, vector<1x1xf32>
      %44 = vector.shape_cast %43 : vector<1x1xf32> to vector<1x1xf32>
      %45 = vector.broadcast %44 : vector<1x1xf32> to vector<8x128xf32>
      %c0_36 = arith.constant 0 : index
      %c0_37 = arith.constant 0 : index
      %46 = vector.load %arg12[%c0_36, %c0_37] : memref<8x128xf32, #tpu.memory_space<vmem>>, vector<8x128xf32>
      tpu.vector_store %arg12[%c0_36, %c0_37], %45 {strides = array<i32>} : memref<8x128xf32, #tpu.memory_space<vmem>>, vector<8x128xf32>,
    } else {
    }
    return
  }
  func.func @transform_0(%arg0: i32, %arg1: i32, %arg2: i32) -> (i32, i32) {
    %c0_i32 = arith.constant 0 : i32
    return %arg0, %arg2 : i32, i32
  }
  func.func @transform_1(%arg0: i32, %arg1: i32, %arg2: i32) -> (i32, i32) {
    %c0_i32 = arith.constant 0 : i32
    return %arg2, %arg1 : i32, i32
  }
  func.func @transform_2(%arg0: i32, %arg1: i32, %arg2: i32) -> (i32, i32) {
    %c0_i32 = arith.constant 0 : i32
    return %arg2, %arg1 : i32, i32
  }
  func.func @transform_3(%arg0: i32, %arg1: i32, %arg2: i32) -> (i32, i32) {
    %c0_i32 = arith.constant 0 : i32
    %c0_i32_0 = arith.constant 0 : i32
    return %c0_i32, %arg1 : i32, i32
  }
  func.func @transform_4(%arg0: i32, %arg1: i32, %arg2: i32) -> (i32, i32) {
    %c0_i32 = arith.constant 0 : i32
    %c0_i32_0 = arith.constant 0 : i32
    return %c0_i32, %arg1 : i32, i32
  }
  func.func @transform_5(%arg0: i32, %arg1: i32, %arg2: i32) -> (i32, i32) {
    %c0_i32 = arith.constant 0 : i32
    return %arg2, %arg1 : i32, i32
  }
  func.func @transform_6(%arg0: i32, %arg1: i32, %arg2: i32) -> (i32, i32) {
    %c0_i32 = arith.constant 0 : i32
    %c0_i32_0 = arith.constant 0 : i32
    return %c0_i32, %arg1 : i32, i32
  }
  func.func @transform_7(%arg0: i32, %arg1: i32, %arg2: i32) -> (i32, i32) {
    %c0_i32 = arith.constant 0 : i32
    return %arg0, %arg1 : i32, i32
  }
  func.func @transform_8(%arg0: i32, %arg1: i32, %arg2: i32) -> (i32, i32) {
    %c0_i32 = arith.constant 0 : i32
    return %arg0, %arg1 : i32, i32
  }
  func.func @transform_9(%arg0: i32, %arg1: i32, %arg2: i32) -> (i32, i32) {
    %c0_i32 = arith.constant 0 : i32
    return %arg0, %arg1 : i32, i32
  }
}

</mosaic_0001>

<llo_original>
// kernel: tpu_custom_call.1
$region0: #{tpu_custom_call.1}
  #allocation0 [shape = 'u32[]', space=smem, size = 0x4, offset = 0x4, fixed_abs, tag = 'smem constant byte address 0x4 - core index']
  #allocation1 [shape = 'u32[144,128]{1,0:T(1,128)}', space=vmem, size = 0x12000, scoped, tag = 'internal scratch']
  #allocation2 [shape = 'f32[8,128]{1,0:T(8,128)}', space=vmem, size = 0x1000, scoped, tag = 'scratch operand']
  #allocation3 [shape = 'f32[1,1]{1,0:T(1,128)}', space=vmem, size = 0x200, scoped, tag = 'scratch operand']
  #allocation4 [shape = 'f32[1,1]{1,0:T(1,128)}', space=vmem, size = 0x200, scoped, tag = 'scratch operand']
  %s0 = inlined_call_operand.hbm [shape: f32[8,128], index: 0, kind: input, shape index: {}]
  %s1 = inlined_call_operand.hbm [shape: f32[128,128], index: 1, kind: input, shape index: {}]
  %s2 = inlined_call_operand.hbm [shape: f32[128,128], index: 2, kind: input, shape index: {}]
  %s3 = inlined_call_operand.vmem [shape: f32[1,128], index: 3, kind: input, shape index: {}]
  %s4 = inlined_call_operand.vmem [shape: f32[1,128], index: 4, kind: input, shape index: {}]
  %s5 = inlined_call_operand.hbm [shape: f32[128,128], index: 5, kind: input, shape index: {}]
  %s6 = inlined_call_operand.vmem [shape: f32[1,128], index: 6, kind: input, shape index: {}]
  %s7 = inlined_call_operand.hbm [shape: f32[8,128], index: 7, kind: output, shape index: {0}]
  %s8 = inlined_call_operand.hbm [shape: f32[8,128], index: 8, kind: output, shape index: {1}]
  %s9 = inlined_call_operand.hbm [shape: f32[8,128], index: 9, kind: output, shape index: {2}]
  %10 = xla_tuple %s7, %s8, %s9
  %s11 = sld [smem:[#allocation0]]
  $region86: #{tpu_custom_call.1} parent=0
    _
  %s13 = ssub.s32 1, %s11
  %s14 = scalar_select 0, %s13, %s11
  $region1: #{tpu_custom_call.1} parent=0
    #allocation5 [shape = 'u8[4096]{0}', space=vmem, size = 0x1000, scoped, tag = 'input window, operand 0, single buffered']
    #allocation6 [shape = 's32[1]{0}', space=sflag, size = 0x4, scoped, tag = 'scoped memory for tpu_custom_call.1']
    #allocation7 [shape = 's32[1]{0}', space=sflag, size = 0x4, scoped, tag = 'scoped memory for tpu_custom_call.1']
    #allocation8 [shape = 'u8[65536]{0}', space=vmem, size = 0x10000, scoped, tag = 'input window, operand 1, single buffered']
    #allocation9 [shape = 's32[1]{0}', space=sflag, size = 0x4, scoped, tag = 'scoped memory for tpu_custom_call.1']
    #allocation10 [shape = 'u8[65536]{0}', space=vmem, size = 0x10000, scoped, tag = 'input window, operand 2, single buffered']
    #allocation11 [shape = 'u8[65536]{0}', space=vmem, size = 0x10000, scoped, tag = 'input window, operand 5, single buffered']
    #allocation12 [shape = 's32[1]{0}', space=sflag, size = 0x4, scoped, tag = 'scoped memory for tpu_custom_call.1']
    #allocation13 [shape = 'u8[4096]{0}', space=vmem, size = 0x1000, scoped, tag = 'output window, operand 0, single buffered']
    #allocation14 [shape = 'u8[4096]{0}', space=vmem, size = 0x1000, scoped, tag = 'output window, operand 1, single buffered']
    #allocation15 [shape = 's32[1]{0}', space=sflag, size = 0x4, scoped, tag = 'scoped memory for tpu_custom_call.1']
    #allocation16 [shape = 'u8[4096]{0}', space=vmem, size = 0x1000, scoped, tag = 'output window, operand 2, single buffered']
    %15 = vsyncpa [#allocation6], 0
    %16 = vsyncpa [#allocation9], 0
    %17 = vsyncpa [#allocation12], 0
    %18 = vsyncpa [#allocation7], 0
    %19 = vsyncpa [#allocation15], 0
    // Predicated region
    $region2: #{tpu_custom_call.1} parent=1 // pred_check
      _
    $region3: #{tpu_custom_call.1} parent=1 // pred_check_branch
      %21 = sbr.rel (0) target = $region5
    $region4: #{tpu_custom_call.1} parent=1 // pred_region
      %s23 = ssub.s32 128, 128
      %24 = vsyncadd [#allocation6], %s23
      %s26 = sshll.u32 [#allocation5], 4
      %s27 = int_to_ptr.vmem [resolvable:$true] %s26
      %29 = dma.hbm_to_vmem [thread:$0]  %s0, 128, %s27, [#allocation6]
    $region5: #{tpu_custom_call.1} parent=1 // pred_fallthru
      _
    // Predicated region
    $region6: #{tpu_custom_call.1} parent=1 // pred_check
      _
    $region7: #{tpu_custom_call.1} parent=1 // pred_check_branch
      %31 = sbr.rel (0) target = $region9
    $region8: #{tpu_custom_call.1} parent=1 // pred_region
      %s33 = ssub.s32 2048, 2048
      %34 = vsyncadd [#allocation9], %s33
      %s35 = sshll.u32 [#allocation8], 4
      %s36 = int_to_ptr.vmem [resolvable:$true] %s35
      %41 = dma.hbm_to_vmem [thread:$0]  %s1, 2048, %s36, [#allocation9], 128, 128, 8
    $region9: #{tpu_custom_call.1} parent=1 // pred_fallthru
      _
    // Predicated region
    $region10: #{tpu_custom_call.1} parent=1 // pred_check
      _
    $region11: #{tpu_custom_call.1} parent=1 // pred_check_branch
      %43 = sbr.rel (0) target = $region13
    $region12: #{tpu_custom_call.1} parent=1 // pred_region
      %s45 = ssub.s32 2048, 2048
      %46 = vsyncadd [#allocation9], %s45
      %s47 = sshll.u32 [#allocation10], 4
      %s48 = int_to_ptr.vmem [resolvable:$true] %s47
      %53 = dma.hbm_to_vmem [thread:$0]  %s2, 2048, %s48, [#allocation9], 128, 128, 8
    $region13: #{tpu_custom_call.1} parent=1 // pred_fallthru
      _
    // Predicated region
    $region14: #{tpu_custom_call.1} parent=1 // pred_check
      _
    $region15: #{tpu_custom_call.1} parent=1 // pred_check_branch
      %55 = sbr.rel (0) target = $region17
    $region16: #{tpu_custom_call.1} parent=1 // pred_region
      _
    $region17: #{tpu_custom_call.1} parent=1 // pred_fallthru
      _
    // Predicated region
    $region18: #{tpu_custom_call.1} parent=1 // pred_check
      _
    $region19: #{tpu_custom_call.1} parent=1 // pred_check_branch
      %57 = sbr.rel (0) target = $region21
    $region20: #{tpu_custom_call.1} parent=1 // pred_region
      _
    $region21: #{tpu_custom_call.1} parent=1 // pred_fallthru
      _
    // Predicated region
    $region22: #{tpu_custom_call.1} parent=1 // pred_check
      _
    $region23: #{tpu_custom_call.1} parent=1 // pred_check_branch
      %59 = sbr.rel (0) target = $region25
    $region24: #{tpu_custom_call.1} parent=1 // pred_region
      %s61 = ssub.s32 2048, 2048
      %62 = vsyncadd [#allocation12], %s61
      %s63 = sshll.u32 [#allocation11], 4
      %s64 = int_to_ptr.vmem [resolvable:$true] %s63
      %69 = dma.hbm_to_vmem [thread:$0]  %s5, 2048, %s64, [#allocation12], 128, 128, 8
    $region25: #{tpu_custom_call.1} parent=1 // pred_fallthru
      _
    // Predicated region
    $region26: #{tpu_custom_call.1} parent=1 // pred_check
      _
    $region27: #{tpu_custom_call.1} parent=1 // pred_check_branch
      %71 = sbr.rel (0) target = $region29
    $region28: #{tpu_custom_call.1} parent=1 // pred_region
      _
    $region29: #{tpu_custom_call.1} parent=1 // pred_fallthru
      _
    // Predicated region
    $region30: #{tpu_custom_call.1} parent=1 // pred_check
      _
    $region31: #{tpu_custom_call.1} parent=1 // pred_check_branch
      %73 = sbr.rel (0) target = $region33
    $region32: #{tpu_custom_call.1} parent=1 // pred_region
      %74 = dma.done [#allocation6], 128
    $region33: #{tpu_custom_call.1} parent=1 // pred_fallthru
      _
    // Predicated region
    $region34: #{tpu_custom_call.1} parent=1 // pred_check
      _
    $region35: #{tpu_custom_call.1} parent=1 // pred_check_branch
      %76 = sbr.rel (0) target = $region37
    $region36: #{tpu_custom_call.1} parent=1 // pred_region
      %77 = dma.done [#allocation9], 2048
    $region37: #{tpu_custom_call.1} parent=1 // pred_fallthru
      _
    // Predicated region
    $region38: #{tpu_custom_call.1} parent=1 // pred_check
      _
    $region39: #{tpu_custom_call.1} parent=1 // pred_check_branch
      %79 = sbr.rel (0) target = $region41
    $region40: #{tpu_custom_call.1} parent=1 // pred_region
      %80 = dma.done [#allocation9], 2048
    $region41: #{tpu_custom_call.1} parent=1 // pred_fallthru
      _
    // Predicated region
    $region42: #{tpu_custom_call.1} parent=1 // pred_check
      _
    $region43: #{tpu_custom_call.1} parent=1 // pred_check_branch
      %82 = sbr.rel (0) target = $region45
    $region44: #{tpu_custom_call.1} parent=1 // pred_region
      %83 = dma.done [#allocation12], 2048
    $region45: #{tpu_custom_call.1} parent=1 // pred_fallthru
      _
    %p84 = scmp.eq.s32.totalorder 0, 0
    // Predicated region
    $region46: #{tpu_custom_call.1} parent=1 // pred_check
      %p85 = pneg %p84
    $region47: #{tpu_custom_call.1} parent=1 // pred_check_branch
      %87 = sbr.rel (%p85) target = $region49
    $region48: #{tpu_custom_call.1} parent=1 // pred_region
      %88 = vst [vmem:[#allocation2] sm:$0xff] 0.0
      %vm89 = vcmask 0
      %90 = vst.msk [vmem:[#allocation3] sm:$0x1] %vm89, 0.0
      %91 = vst.msk [vmem:[#allocation4] sm:$0x1] %vm89, 0.0
    $region49: #{tpu_custom_call.1} parent=1 // pred_fallthru
      _
    %v92 = vld [vmem:[#allocation8] sm:$0xff]
    %v93 = vld [vmem:[#allocation8 + $0x8] sm:$0xff]
    %v94 = vld [vmem:[#allocation8 + $0x10] sm:$0xff]
    %v95 = vld [vmem:[#allocation8 + $0x18] sm:$0xff]
    %v96 = vld [vmem:[#allocation8 + $0x20] sm:$0xff]
    %v97 = vld [vmem:[#allocation8 + $0x28] sm:$0xff]
    %v98 = vld [vmem:[#allocation8 + $0x30] sm:$0xff]
    %v99 = vld [vmem:[#allocation8 + $0x38] sm:$0xff]
    %v100 = vld [vmem:[#allocation8 + $0x40] sm:$0xff]
    %v101 = vld [vmem:[#allocation8 + $0x48] sm:$0xff]
    %v102 = vld [vmem:[#allocation8 + $0x50] sm:$0xff]
    %v103 = vld [vmem:[#allocation8 + $0x58] sm:$0xff]
    %v104 = vld [vmem:[#allocation8 + $0x60] sm:$0xff]
    %v105 = vld [vmem:[#allocation8 + $0x68] sm:$0xff]
    %v106 = vld [vmem:[#allocation8 + $0x70] sm:$0xff]
    %v107 = vld [vmem:[#allocation8 + $0x78] sm:$0xff]
    %v108 = vld [vmem:[#allocation10] sm:$0xff]
    %v109 = vld [vmem:[#allocation10 + $0x8] sm:$0xff]
    %v110 = vld [vmem:[#allocation10 + $0x10] sm:$0xff]
    %v111 = vld [vmem:[#allocation10 + $0x18] sm:$0xff]
    %v112 = vld [vmem:[#allocation10 + $0x20] sm:$0xff]
    %v113 = vld [vmem:[#allocation10 + $0x28] sm:$0xff]
    %v114 = vld [vmem:[#allocation10 + $0x30] sm:$0xff]
    %v115 = vld [vmem:[#allocation10 + $0x38] sm:$0xff]
    %v116 = vld [vmem:[#allocation10 + $0x40] sm:$0xff]
    %v117 = vld [vmem:[#allocation10 + $0x48] sm:$0xff]
    %v118 = vld [vmem:[#allocation10 + $0x50] sm:$0xff]
    %v119 = vld [vmem:[#allocation10 + $0x58] sm:$0xff]
    %v120 = vld [vmem:[#allocation10 + $0x60] sm:$0xff]
    %v121 = vld [vmem:[#allocation10 + $0x68] sm:$0xff]
    %v122 = vld [vmem:[#allocation10 + $0x70] sm:$0xff]
    %v123 = vld [vmem:[#allocation10 + $0x78] sm:$0xff]
    %v124 = vld [vmem:[#allocation11] sm:$0xff]
    %v125 = vld [vmem:[#allocation11 + $0x8] sm:$0xff]
    %v126 = vld [vmem:[#allocation11 + $0x10] sm:$0xff]
    %v127 = vld [vmem:[#allocation11 + $0x18] sm:$0xff]
    %v128 = vld [vmem:[#allocation11 + $0x20] sm:$0xff]
    %v129 = vld [vmem:[#allocation11 + $0x28] sm:$0xff]
    %v130 = vld [vmem:[#allocation11 + $0x30] sm:$0xff]
    %v131 = vld [vmem:[#allocation11 + $0x38] sm:$0xff]
    %v132 = vld [vmem:[#allocation11 + $0x40] sm:$0xff]
    %v133 = vld [vmem:[#allocation11 + $0x48] sm:$0xff]
    %v134 = vld [vmem:[#allocation11 + $0x50] sm:$0xff]
    %v135 = vld [vmem:[#allocation11 + $0x58] sm:$0xff]
    %v136 = vld [vmem:[#allocation11 + $0x60] sm:$0xff]
    %v137 = vld [vmem:[#allocation11 + $0x68] sm:$0xff]
    %v138 = vld [vmem:[#allocation11 + $0x70] sm:$0xff]
    %v139 = vld [vmem:[#allocation11 + $0x78] sm:$0xff]
    %v140 = vmul.f32 %v108, 1.442695
    %v141 = vpow.pop %v140
    %v142 = vmul.f32 %v109, 1.442695
    %v143 = vpow.pop %v142
    %v144 = vmul.f32 %v110, 1.442695
    %v145 = vpow.pop %v144
    %v146 = vmul.f32 %v111, 1.442695
    %v147 = vpow.pop %v146
    %v148 = vmul.f32 %v112, 1.442695
    %v149 = vpow.pop %v148
    %v150 = vmul.f32 %v113, 1.442695
    %v151 = vpow.pop %v150
    %v152 = vmul.f32 %v114, 1.442695
    %v153 = vpow.pop %v152
    %v154 = vmul.f32 %v115, 1.442695
    %v155 = vpow.pop %v154
    %v156 = vmul.f32 %v116, 1.442695
    %v157 = vpow.pop %v156
    %v158 = vmul.f32 %v117, 1.442695
    %v159 = vpow.pop %v158
    %v160 = vmul.f32 %v118, 1.442695
    %v161 = vpow.pop %v160
    %v162 = vmul.f32 %v119, 1.442695
    %v163 = vpow.pop %v162
    %v164 = vmul.f32 %v120, 1.442695
    %v165 = vpow.pop %v164
    %v166 = vmul.f32 %v121, 1.442695
    %v167 = vpow.pop %v166
    %v168 = vmul.f32 %v122, 1.442695
    %v169 = vpow.pop %v168
    %v170 = vmul.f32 %v123, 1.442695
    %v171 = vpow.pop %v170
    %v172 = vadd.f32 %v141, 1.0
    %v173 = vadd.f32 %v143, 1.0
    %v174 = vadd.f32 %v145, 1.0
    %v175 = vadd.f32 %v147, 1.0
    %v176 = vadd.f32 %v149, 1.0
    %v177 = vadd.f32 %v151, 1.0
    %v178 = vadd.f32 %v153, 1.0
    %v179 = vadd.f32 %v155, 1.0
    %v180 = vadd.f32 %v157, 1.0
    %v181 = vadd.f32 %v159, 1.0
    %v182 = vadd.f32 %v161, 1.0
    %v183 = vadd.f32 %v163, 1.0
    %v184 = vadd.f32 %v165, 1.0
    %v185 = vadd.f32 %v167, 1.0
    %v186 = vadd.f32 %v169, 1.0
    %v187 = vadd.f32 %v171, 1.0
    %v188 = vlog2.pop %v172
    %v189 = vmul.f32 %v188, 0.6931472
    %v190 = vlog2.pop %v173
    %v191 = vmul.f32 %v190, 0.6931472
    %v192 = vlog2.pop %v174
    %v193 = vmul.f32 %v192, 0.6931472
    %v194 = vlog2.pop %v175
    %v195 = vmul.f32 %v194, 0.6931472
    %v196 = vlog2.pop %v176
    %v197 = vmul.f32 %v196, 0.6931472
    %v198 = vlog2.pop %v177
    %v199 = vmul.f32 %v198, 0.6931472
    %v200 = vlog2.pop %v178
    %v201 = vmul.f32 %v200, 0.6931472
    %v202 = vlog2.pop %v179
    %v203 = vmul.f32 %v202, 0.6931472
    %v204 = vlog2.pop %v180
    %v205 = vmul.f32 %v204, 0.6931472
    %v206 = vlog2.pop %v181
    %v207 = vmul.f32 %v206, 0.6931472
    %v208 = vlog2.pop %v182
    %v209 = vmul.f32 %v208, 0.6931472
    %v210 = vlog2.pop %v183
    %v211 = vmul.f32 %v210, 0.6931472
    %v212 = vlog2.pop %v184
    %v213 = vmul.f32 %v212, 0.6931472
    %v214 = vlog2.pop %v185
    %v215 = vmul.f32 %v214, 0.6931472
    %v216 = vlog2.pop %v186
    %v217 = vmul.f32 %v216, 0.6931472
    %v218 = vlog2.pop %v187
    %v219 = vmul.f32 %v218, 0.6931472
    %v220 = vmul.f32 %v189, %v124
    %v221 = vmul.f32 %v191, %v125
    %v222 = vmul.f32 %v193, %v126
    %v223 = vmul.f32 %v195, %v127
    %v224 = vmul.f32 %v197, %v128
    %v225 = vmul.f32 %v199, %v129
    %v226 = vmul.f32 %v201, %v130
    %v227 = vmul.f32 %v203, %v131
    %v228 = vmul.f32 %v205, %v132
    %v229 = vmul.f32 %v207, %v133
    %v230 = vmul.f32 %v209, %v134
    %v231 = vmul.f32 %v211, %v135
    %v232 = vmul.f32 %v213, %v136
    %v233 = vmul.f32 %v215, %v137
    %v234 = vmul.f32 %v217, %v138
    %v235 = vmul.f32 %v219, %v139
    %v236 = vadd.f32 %v92, %v220
    %v237 = vadd.f32 %v93, %v221
    %v238 = vadd.f32 %v94, %v222
    %v239 = vadd.f32 %v95, %v223
    %v240 = vadd.f32 %v96, %v224
    %v241 = vadd.f32 %v97, %v225
    %v242 = vadd.f32 %v98, %v226
    %v243 = vadd.f32 %v99, %v227
    %v244 = vadd.f32 %v100, %v228
    %v245 = vadd.f32 %v101, %v229
    %v246 = vadd.f32 %v102, %v230
    %v247 = vadd.f32 %v103, %v231
    %v248 = vadd.f32 %v104, %v232
    %v249 = vadd.f32 %v105, %v233
    %v250 = vadd.f32 %v106, %v234
    %v251 = vadd.f32 %v107, %v235
    %v252 = vld [vmem:[#allocation2] sm:$0xff]
    %v253 = vld [vmem:[#allocation5] sm:$0xff]
    %254 = vmatprep.subr.mxu0 0.0
    %255 = vmatpush1.msra.mxu0 %v236
    %256 = vmatprep.subr.mxu0 0.0
    %257 = vmatpush1.msra.mxu0 %v237
    %258 = vmatprep.subr.mxu0 0.0
    %259 = vmatpush1.msra.mxu0 %v238
    %260 = vmatprep.subr.mxu0 0.0
    %261 = vmatpush1.msra.mxu0 %v239
    %262 = vmatprep.subr.mxu0 0.0
    %263 = vmatpush1.msra.mxu0 %v240
    %264 = vmatprep.subr.mxu0 0.0
    %265 = vmatpush1.msra.mxu0 %v241
    %266 = vmatprep.subr.mxu0 0.0
    %267 = vmatpush1.msra.mxu0 %v242
    %268 = vmatprep.subr.mxu0 0.0
    %269 = vmatpush1.msra.mxu0 %v243
    %270 = vmatprep.subr.mxu0 0.0
    %271 = vmatpush1.msra.mxu0 %v244
    %272 = vmatprep.subr.mxu0 0.0
    %273 = vmatpush1.msra.mxu0 %v245
    %274 = vmatprep.subr.mxu0 0.0
    %275 = vmatpush1.msra.mxu0 %v246
    %276 = vmatprep.subr.mxu0 0.0
    %277 = vmatpush1.msra.mxu0 %v247
    %278 = vmatprep.subr.mxu0 0.0
    %279 = vmatpush1.msra.mxu0 %v248
    %280 = vmatprep.subr.mxu0 0.0
    %281 = vmatpush1.msra.mxu0 %v249
    %282 = vmatprep.subr.mxu0 0.0
    %283 = vmatpush1.msra.mxu0 %v250
    %284 = vmatprep.subr.mxu0 0.0
    %285 = vmatpush1.msra.mxu0 %v251
    %286 = vmatprep.subr.mxu0 0.0
    %287 = vmatpush1.msra.mxu0 0.0
    %288 = vmatprep.subr.mxu0 0.0
    %289 = vmatpush1.msra.mxu0 0.0
    %290 = vmatprep.subr.mxu0 0.0
    %291 = vmatpush1.msra.mxu0 0.0
    %292 = vmatprep.subr.mxu0 0.0
    %293 = vmatpush1.msra.mxu0 0.0
    %294 = vmatprep.subr.mxu0 0.0
    %295 = vmatpush1.msra.mxu0 0.0
    %296 = vmatprep.subr.mxu0 0.0
    %297 = vmatpush1.msra.mxu0 0.0
    %298 = vmatprep.subr.mxu0 0.0
    %299 = vmatpush1.msra.mxu0 0.0
    %300 = vmatprep.subr.mxu0 0.0
    %301 = vmatpush1.msra.mxu0 0.0
    %302 = vmatprep.subr.mxu0 0.0
    %303 = vmatpush1.msra.mxu0 0.0
    %304 = vmatprep.subr.mxu0 0.0
    %305 = vmatpush1.msra.mxu0 0.0
    %306 = vmatprep.subr.mxu0 0.0
    %307 = vmatpush1.msra.mxu0 0.0
    %308 = vmatprep.subr.mxu0 0.0
    %309 = vmatpush1.msra.mxu0 0.0
    %310 = vmatprep.subr.mxu0 0.0
    %311 = vmatpush1.msra.mxu0 0.0
    %312 = vmatprep.subr.mxu0 0.0
    %313 = vmatpush1.msra.mxu0 0.0
    %314 = vmatprep.subr.mxu0 0.0
    %315 = vmatpush1.msra.mxu0 0.0
    %316 = vmatprep.subr.mxu0 0.0
    %317 = vmatpush1.msra.mxu0 0.0
    %318 = vmatprep.mubr.f32.mxu0 0.0
    %319 = vmatmul.mubr.f32.gmra.mrb[0].mxu0 %v253
    %v320 = vpop.f32.mrb[0].mxu0
    %v321 = vadd.f32 0.0, %v320
    %v322 = vpop.f32.mrb[0].mxu0
    %323 = vdwg.mxu0
    %v324 = vadd.f32 %v252, %v321
    %325 = vst [vmem:[#allocation2] sm:$0xff] %v324
    %p326 = scmp.eq.s32.totalorder 0, 0
    // Predicated region
    $region50: #{tpu_custom_call.1} parent=1 // pred_check
      %p327 = pneg %p326
    $region51: #{tpu_custom_call.1} parent=1 // pred_check_branch
      %329 = sbr.rel (%p327) target = $region53
    $region52: #{tpu_custom_call.1} parent=1 // pred_region
      %v330 = vrcp.pop %v141
      %v331 = vrcp.pop %v143
      %v332 = vrcp.pop %v145
      %v333 = vrcp.pop %v147
      %v334 = vrcp.pop %v149
      %v335 = vrcp.pop %v151
      %v336 = vrcp.pop %v153
      %v337 = vrcp.pop %v155
      %v338 = vrcp.pop %v157
      %v339 = vrcp.pop %v159
      %v340 = vrcp.pop %v161
      %v341 = vrcp.pop %v163
      %v342 = vrcp.pop %v165
      %v343 = vrcp.pop %v167
      %v344 = vrcp.pop %v169
      %v345 = vrcp.pop %v171
      %v346 = vld [vmem:[#allocation3] sm:$0x1]
      %v347 = vmul.f32 %v236, %v236
      %v348 = vmul.f32 %v237, %v237
      %v349 = vmul.f32 %v238, %v238
      %v350 = vmul.f32 %v239, %v239
      %v351 = vmul.f32 %v240, %v240
      %v352 = vmul.f32 %v241, %v241
      %v353 = vmul.f32 %v242, %v242
      %v354 = vmul.f32 %v243, %v243
      %v355 = vmul.f32 %v244, %v244
      %v356 = vmul.f32 %v245, %v245
      %v357 = vmul.f32 %v246, %v246
      %v358 = vmul.f32 %v247, %v247
      %v359 = vmul.f32 %v248, %v248
      %v360 = vmul.f32 %v249, %v249
      %v361 = vmul.f32 %v250, %v250
      %v362 = vmul.f32 %v251, %v251
      %v363 = vsub.f32 0.0, %v347
      %v364 = vsub.f32 0.0, %v348
      %v365 = vsub.f32 0.0, %v349
      %v366 = vsub.f32 0.0, %v350
      %v367 = vsub.f32 0.0, %v351
      %v368 = vsub.f32 0.0, %v352
      %v369 = vsub.f32 0.0, %v353
      %v370 = vsub.f32 0.0, %v354
      %v371 = vsub.f32 0.0, %v355
      %v372 = vsub.f32 0.0, %v356
      %v373 = vsub.f32 0.0, %v357
      %v374 = vsub.f32 0.0, %v358
      %v375 = vsub.f32 0.0, %v359
      %v376 = vsub.f32 0.0, %v360
      %v377 = vsub.f32 0.0, %v361
      %v378 = vsub.f32 0.0, %v362
      %v379 = vmul.f32 %v363, 200.0
      %v380 = vmul.f32 %v364, 200.0
      %v381 = vmul.f32 %v365, 200.0
      %v382 = vmul.f32 %v366, 200.0
      %v383 = vmul.f32 %v367, 200.0
      %v384 = vmul.f32 %v368, 200.0
      %v385 = vmul.f32 %v369, 200.0
      %v386 = vmul.f32 %v370, 200.0
      %v387 = vmul.f32 %v371, 200.0
      %v388 = vmul.f32 %v372, 200.0
      %v389 = vmul.f32 %v373, 200.0
      %v390 = vmul.f32 %v374, 200.0
      %v391 = vmul.f32 %v375, 200.0
      %v392 = vmul.f32 %v376, 200.0
      %v393 = vmul.f32 %v377, 200.0
      %v394 = vmul.f32 %v378, 200.0
      %v395 = vadd.f32 %v379, %v380
      %v396 = vadd.f32 %v395, %v381
      %v397 = vadd.f32 %v396, %v382
      %v398 = vadd.f32 %v397, %v383
      %v399 = vadd.f32 %v398, %v384
      %v400 = vadd.f32 %v399, %v385
      %v401 = vadd.f32 %v400, %v386
      %v402 = vadd.f32 %v401, %v387
      %v403 = vadd.f32 %v402, %v388
      %v404 = vadd.f32 %v403, %v389
      %v405 = vadd.f32 %v404, %v390
      %v406 = vadd.f32 %v405, %v391
      %v407 = vadd.f32 %v406, %v392
      %v408 = vadd.f32 %v407, %v393
      %v409 = vadd.f32 %v408, %v394
      %410 = vadd.xlane.f32.xlu0 %v409
      %v411 = vpop.xlane.xlu0 %410
      %v412 = vrot.slane %v411, 4
      %v413 = vadd.f32 %v411, %v412
      %v414 = vrot.slane %v413, 2
      %v415 = vadd.f32 %v413, %v414
      %v416 = vrot.slane %v415, 1
      %v417 = vadd.f32 %v415, %v416
      %s418 = vtos %v417
      %v419 = vstv %s418
      %v420 = vadd.f32 %v346, %v419
      %vm421 = vcmask 0
      %422 = vst.msk [vmem:[#allocation3] sm:$0x1] %vm421, %v420
      %v423 = vld [vmem:[#allocation4] sm:$0x1]
      %v424 = vsub.f32 0.0, %v108
      %v425 = vsub.f32 0.0, %v109
      %v426 = vsub.f32 0.0, %v110
      %v427 = vsub.f32 0.0, %v111
      %v428 = vsub.f32 0.0, %v112
      %v429 = vsub.f32 0.0, %v113
      %v430 = vsub.f32 0.0, %v114
      %v431 = vsub.f32 0.0, %v115
      %v432 = vsub.f32 0.0, %v116
      %v433 = vsub.f32 0.0, %v117
      %v434 = vsub.f32 0.0, %v118
      %v435 = vsub.f32 0.0, %v119
      %v436 = vsub.f32 0.0, %v120
      %v437 = vsub.f32 0.0, %v121
      %v438 = vsub.f32 0.0, %v122
      %v439 = vsub.f32 0.0, %v123
      %v440 = vmul.f32 %v220, %v220
      %v441 = vmul.f32 %v221, %v221
      %v442 = vmul.f32 %v222, %v222
      %v443 = vmul.f32 %v223, %v223
      %v444 = vmul.f32 %v224, %v224
      %v445 = vmul.f32 %v225, %v225
      %v446 = vmul.f32 %v226, %v226
      %v447 = vmul.f32 %v227, %v227
      %v448 = vmul.f32 %v228, %v228
      %v449 = vmul.f32 %v229, %v229
      %v450 = vmul.f32 %v230, %v230
      %v451 = vmul.f32 %v231, %v231
      %v452 = vmul.f32 %v232, %v232
      %v453 = vmul.f32 %v233, %v233
      %v454 = vmul.f32 %v234, %v234
      %v455 = vmul.f32 %v235, %v235
      %v456 = vmul.f32 %v330, 0.5
      %v457 = vmul.f32 %v331, 0.5
      %v458 = vmul.f32 %v332, 0.5
      %v459 = vmul.f32 %v333, 0.5
      %v460 = vmul.f32 %v334, 0.5
      %v461 = vmul.f32 %v335, 0.5
      %v462 = vmul.f32 %v336, 0.5
      %v463 = vmul.f32 %v337, 0.5
      %v464 = vmul.f32 %v338, 0.5
      %v465 = vmul.f32 %v339, 0.5
      %v466 = vmul.f32 %v340, 0.5
      %v467 = vmul.f32 %v341, 0.5
      %v468 = vmul.f32 %v342, 0.5
      %v469 = vmul.f32 %v343, 0.5
      %v470 = vmul.f32 %v344, 0.5
      %v471 = vmul.f32 %v345, 0.5
      %v472 = vmul.f32 %v456, %v330
      %v473 = vmul.f32 %v457, %v331
      %v474 = vmul.f32 %v458, %v332
      %v475 = vmul.f32 %v459, %v333
      %v476 = vmul.f32 %v460, %v334
      %v477 = vmul.f32 %v461, %v335
      %v478 = vmul.f32 %v462, %v336
      %v479 = vmul.f32 %v463, %v337
      %v480 = vmul.f32 %v464, %v338
      %v481 = vmul.f32 %v465, %v339
      %v482 = vmul.f32 %v466, %v340
      %v483 = vmul.f32 %v467, %v341
      %v484 = vmul.f32 %v468, %v342
      %v485 = vmul.f32 %v469, %v343
      %v486 = vmul.f32 %v470, %v344
      %v487 = vmul.f32 %v471, %v345
      %v488 = vmul.f32 %v440, %v472
      %v489 = vmul.f32 %v441, %v473
      %v490 = vmul.f32 %v442, %v474
      %v491 = vmul.f32 %v443, %v475
      %v492 = vmul.f32 %v444, %v476
      %v493 = vmul.f32 %v445, %v477
      %v494 = vmul.f32 %v446, %v478
      %v495 = vmul.f32 %v447, %v479
      %v496 = vmul.f32 %v448, %v480
      %v497 = vmul.f32 %v449, %v481
      %v498 = vmul.f32 %v450, %v482
      %v499 = vmul.f32 %v451, %v483
      %v500 = vmul.f32 %v452, %v484
      %v501 = vmul.f32 %v453, %v485
      %v502 = vmul.f32 %v454, %v486
      %v503 = vmul.f32 %v455, %v487
      %v504 = vsub.f32 %v424, %v488
      %v505 = vsub.f32 %v425, %v489
      %v506 = vsub.f32 %v426, %v490
      %v507 = vsub.f32 %v427, %v491
      %v508 = vsub.f32 %v428, %v492
      %v509 = vsub.f32 %v429, %v493
      %v510 = vsub.f32 %v430, %v494
      %v511 = vsub.f32 %v431, %v495
      %v512 = vsub.f32 %v432, %v496
      %v513 = vsub.f32 %v433, %v497
      %v514 = vsub.f32 %v434, %v498
      %v515 = vsub.f32 %v435, %v499
      %v516 = vsub.f32 %v436, %v500
      %v517 = vsub.f32 %v437, %v501
      %v518 = vsub.f32 %v438, %v502
      %v519 = vsub.f32 %v439, %v503
      %v520 = vadd.f32 %v504, %v505
      %v521 = vadd.f32 %v520, %v506
      %v522 = vadd.f32 %v521, %v507
      %v523 = vadd.f32 %v522, %v508
      %v524 = vadd.f32 %v523, %v509
      %v525 = vadd.f32 %v524, %v510
      %v526 = vadd.f32 %v525, %v511
      %v527 = vadd.f32 %v526, %v512
      %v528 = vadd.f32 %v527, %v513
      %v529 = vadd.f32 %v528, %v514
      %v530 = vadd.f32 %v529, %v515
      %v531 = vadd.f32 %v530, %v516
      %v532 = vadd.f32 %v531, %v517
      %v533 = vadd.f32 %v532, %v518
      %v534 = vadd.f32 %v533, %v519
      %535 = vadd.xlane.f32.xlu0 %v534
      %v536 = vpop.xlane.xlu0 %535
      %v537 = vrot.slane %v536, 4
      %v538 = vadd.f32 %v536, %v537
      %v539 = vrot.slane %v538, 2
      %v540 = vadd.f32 %v538, %v539
      %v541 = vrot.slane %v540, 1
      %v542 = vadd.f32 %v540, %v541
      %s543 = vtos %v542
      %v544 = vstv %s543
      %v545 = vadd.f32 %v423, %v544
      %546 = vst.msk [vmem:[#allocation4] sm:$0x1] %vm421, %v545
    $region53: #{tpu_custom_call.1} parent=1 // pred_fallthru
      _
    // Predicated region
    $region54: #{tpu_custom_call.1} parent=1 // pred_check
      %p547 = pneg %p84
    $region55: #{tpu_custom_call.1} parent=1 // pred_check_branch
      %549 = sbr.rel (%p547) target = $region57
    $region56: #{tpu_custom_call.1} parent=1 // pred_region
      %v550 = vld [vmem:[%s3] sm:$0x1]
      %v551 = vld [vmem:[%s4] sm:$0x1]
      %v552 = vld [vmem:[%s6] sm:$0x1]
      %v553 = vmul.f32 %v551, 1.442695
      %v554 = vpow.pop %v553
      %v555 = vadd.f32 %v554, 1.0
      %v556 = vlog2.pop %v555
      %v557 = vmul.f32 %v556, 0.6931472
      %v558 = vmul.f32 %v557, %v552
      %v559 = vadd.f32 %v550, %v558
      %v560 = vld [vmem:[#allocation2] sm:$0xff]
      %v562 = vlaneseq
      %v563 = vshrl.u32 %v562, 7
      %v564 = vsub.s32 0, %v563
      %v565 = vrot.slane %v559, %v564
      %v567 = vadd.f32 %v560, %v565
      %568 = vst [vmem:[#allocation13] sm:$0xff] %v567
      // Predicated region
      $region58: #{tpu_custom_call.1} parent=56 // pred_check
        %p569 = pneg %p326
      $region59: #{tpu_custom_call.1} parent=56 // pred_check_branch
        %571 = sbr.rel (%p569) target = $region61
      $region60: #{tpu_custom_call.1} parent=56 // pred_region
        %v572 = vrcp.pop %v554
        %v573 = vld [vmem:[#allocation3] sm:$0x1]
        %v574 = vmul.f32 %v559, %v559
        %v575 = vsub.f32 0.0, %v574
        %v576 = vmul.f32 %v575, 200.0
        %vm577 = vcmask 1040384
        %v578 = vsel %vm577, %v576, 0.0
        %579 = vadd.xlane.f32.xlu0 %v578
        %v580 = vpop.xlane.xlu0 %579
        %v581 = vrot.slane %v580, 4
        %v582 = vadd.f32 %v580, %v581
        %v583 = vrot.slane %v582, 2
        %v584 = vadd.f32 %v582, %v583
        %v585 = vrot.slane %v584, 1
        %v586 = vadd.f32 %v584, %v585
        %s587 = vtos %v586
        %v588 = vstv %s587
        %v589 = vadd.f32 %v573, %v588
        %vm590 = vcmask 0
        %591 = vst.msk [vmem:[#allocation3] sm:$0x1] %vm590, %v589
        %v592 = vld [vmem:[#allocation4] sm:$0x1]
        %v593 = vsub.f32 0.0, %v551
        %v594 = vmul.f32 %v558, %v558
        %v595 = vmul.f32 %v572, 0.5
        %v596 = vmul.f32 %v595, %v572
        %v597 = vmul.f32 %v594, %v596
        %v598 = vsub.f32 %v593, %v597
        %v599 = vsel %vm577, %v598, 0.0
        %600 = vadd.xlane.f32.xlu0 %v599
        %v601 = vpop.xlane.xlu0 %600
        %v602 = vrot.slane %v601, 4
        %v603 = vadd.f32 %v601, %v602
        %v604 = vrot.slane %v603, 2
        %v605 = vadd.f32 %v603, %v604
        %v606 = vrot.slane %v605, 1
        %v607 = vadd.f32 %v605, %v606
        %s608 = vtos %v607
        %v609 = vstv %s608
        %v610 = vadd.f32 %v592, %v609
        %611 = vst.msk [vmem:[#allocation4] sm:$0x1] %vm590, %v610
      $region61: #{tpu_custom_call.1} parent=56 // pred_fallthru
        _
      %v612 = vld [vmem:[#allocation3] sm:$0x1]
      %v614 = vlaneseq
      %v615 = vshrl.u32 %v614, 7
      %v616 = vsub.s32 0, %v615
      %v617 = vrot.slane %v612, %v616
      %618 = vset.pattern.permute.xlu0 0
      %619 = vperm.xlu0 %618, %v617
      %v620 = vpop.permute.xlu0 %619
      %622 = vst [vmem:[#allocation14] sm:$0xff] %v620
      %v623 = vld [vmem:[#allocation4] sm:$0x1]
      %v625 = vlaneseq
      %v626 = vshrl.u32 %v625, 7
      %v627 = vsub.s32 0, %v626
      %v628 = vrot.slane %v623, %v627
      %629 = vset.pattern.permute.xlu0 0
      %630 = vperm.xlu0 %629, %v628
      %v631 = vpop.permute.xlu0 %630
      %633 = vst [vmem:[#allocation16] sm:$0xff] %v631
    $region57: #{tpu_custom_call.1} parent=1 // pred_fallthru
      _
    // Predicated region
    $region62: #{tpu_custom_call.1} parent=1 // pred_check
      _
    $region63: #{tpu_custom_call.1} parent=1 // pred_check_branch
      %635 = sbr.rel (0) target = $region65
    $region64: #{tpu_custom_call.1} parent=1 // pred_region
      %s637 = ssub.s32 128, 128
      %638 = vsyncadd [#allocation7], %s637
      %s640 = sshll.u32 [#allocation13], 4
      %s641 = int_to_ptr.vmem [resolvable:$true] %s640
      %643 = dma.vmem_to_hbm [thread:$0]  %s641, 128, %s7, [#allocation7]
    $region65: #{tpu_custom_call.1} parent=1 // pred_fallthru
      _
    // Predicated region
    $region66: #{tpu_custom_call.1} parent=1 // pred_check
      _
    $region67: #{tpu_custom_call.1} parent=1 // pred_check_branch
      %645 = sbr.rel (0) target = $region69
    $region68: #{tpu_custom_call.1} parent=1 // pred_region
      %s647 = ssub.s32 128, 128
      %648 = vsyncadd [#allocation15], %s647
      %s650 = sshll.u32 [#allocation14], 4
      %s651 = int_to_ptr.vmem [resolvable:$true] %s650
      %653 = dma.vmem_to_hbm [thread:$0]  %s651, 128, %s8, [#allocation15]
    $region69: #{tpu_custom_call.1} parent=1 // pred_fallthru
      _
    // Predicated region
    $region70: #{tpu_custom_call.1} parent=1 // pred_check
      _
    $region71: #{tpu_custom_call.1} parent=1 // pred_check_branch
      %655 = sbr.rel (0) target = $region73
    $region72: #{tpu_custom_call.1} parent=1 // pred_region
      %s657 = ssub.s32 128, 128
      %658 = vsyncadd [#allocation15], %s657
      %s660 = sshll.u32 [#allocation16], 4
      %s661 = int_to_ptr.vmem [resolvable:$true] %s660
      %663 = dma.vmem_to_hbm [thread:$0]  %s661, 128, %s9, [#allocation15]
    $region73: #{tpu_custom_call.1} parent=1 // pred_fallthru
      _
    // Predicated region
    $region74: #{tpu_custom_call.1} parent=1 // pred_check
      _
    $region75: #{tpu_custom_call.1} parent=1 // pred_check_branch
      %665 = sbr.rel (0) target = $region77
    $region76: #{tpu_custom_call.1} parent=1 // pred_region
      %666 = dma.done [#allocation7], 128
    $region77: #{tpu_custom_call.1} parent=1 // pred_fallthru
      _
    // Predicated region
    $region78: #{tpu_custom_call.1} parent=1 // pred_check
      _
    $region79: #{tpu_custom_call.1} parent=1 // pred_check_branch
      %668 = sbr.rel (0) target = $region81
    $region80: #{tpu_custom_call.1} parent=1 // pred_region
      %669 = dma.done [#allocation15], 128
    $region81: #{tpu_custom_call.1} parent=1 // pred_fallthru
      _
    // Predicated region
    $region82: #{tpu_custom_call.1} parent=1 // pred_check
      _
    $region83: #{tpu_custom_call.1} parent=1 // pred_check_branch
      %671 = sbr.rel (0) target = $region85
    $region84: #{tpu_custom_call.1} parent=1 // pred_region
      %672 = dma.done [#allocation15], 128
    $region85: #{tpu_custom_call.1} parent=1 // pred_fallthru
      _
    %673 = vsyncpa [#allocation6], 1
    %674 = vsyncpa [#allocation9], 1
    %675 = vsyncpa [#allocation12], 1
    %676 = vsyncpa [#allocation7], 1
    %677 = vsyncpa [#allocation15], 1

</llo_original>
